<compile_context>
chip_gen: v7x
topology: tpu7x:2x2x1
jax: 0.10.0
libtpu: 0.0.40
codegen_flags: <defaults>
</compile_context>

<pallas_src>
import functools

import jax
import jax.numpy as jnp
from jax.experimental import pallas as pl
from jax.experimental.pallas import tpu as pltpu

_SUB = 16  # sublane granularity safe for both f32 (8) and bf16 (16) blocks


def _round_up(x: int, m: int) -> int:
    return ((x + m - 1) // m) * m


def _choose_batch_tile(b_pad: int, desired: int) -> int:
    """Largest multiple of _SUB that divides b_pad, is <= desired, and (when
    b_pad allows) leaves at least 2 grid steps so both v7x TensorCores get work.
    Dividing b_pad exactly avoids any pad-to-tile copy of x."""
    cap = desired
    if b_pad >= 2 * _SUB:
        cap = min(cap, (b_pad // 2 // _SUB) * _SUB)   # guarantee >= 2 grid steps
    cap = max(_SUB, (cap // _SUB) * _SUB)
    cap = min(cap, b_pad)
    t = cap
    while t > _SUB:
        if b_pad % t == 0:
            return t
        t -= _SUB
    return _SUB


def make_ann_iris_kernel(n_layers: int, output_size: int):
    """Build a kernel for a fixed (static) number of hidden layers / classes."""

    def kernel(x_ref, w_in_ref, b_in_ref, w_hid_ref, b_hid_ref,
               w_out_ref, b_out_ref, o_ref):
        # input layer + ReLU (bf16 MXU inputs, f32 accumulate, f32 epilogue)
        h = jnp.dot(x_ref[...], w_in_ref[...],
                    preferred_element_type=jnp.float32) + b_in_ref[...]
        h = jnp.maximum(h, 0.0)

        # hidden layers + ReLU (static unroll; n_layers is small)
        for i in range(n_layers):
            h = jnp.dot(h.astype(jnp.bfloat16), w_hid_ref[i],
                        preferred_element_type=jnp.float32) + b_hid_ref[i]
            h = jnp.maximum(h, 0.0)

        # output layer: 128-lane padded weights (proven MXU path); padded bias
        # lanes are -1e30 so exp() of the pad lanes is exactly 0 in f32.
        logits = jnp.dot(h.astype(jnp.bfloat16), w_out_ref[...],
                         preferred_element_type=jnp.float32) + b_out_ref[...]

        # numerically stable softmax over the last axis (all in f32);
        # 1/denom on the EUP (free slot).
        m = jnp.max(logits, axis=-1, keepdims=True)
        e = jnp.exp(logits - m)
        denom = jnp.sum(e, axis=-1, keepdims=True)
        probs = e * pl.reciprocal(denom, approx=True)

        # store only the real classes -> tiny writeback, no wrapper lane slice
        o_ref[...] = probs[:, :output_size].astype(o_ref.dtype)

    return kernel


def ann_iris_forward(x, params, n_layers: int, output_size: int,
                     tb: int = 2048, out_dtype=jnp.bfloat16):
    """x: (B, inputSize) float32. params: dict from prepare_params()."""
    B, I = x.shape

    # pre-cast input to bf16 (MXU consumes bf16 anyway; halves input DMA)
    x = x.astype(jnp.bfloat16)

    b_pad = _round_up(B, _SUB)
    if b_pad != B:
        x = jnp.pad(x, ((0, b_pad - B), (0, 0)))

    tb = _choose_batch_tile(b_pad, tb)
    grid = (b_pad // tb,)

    out_pad = pl.pallas_call(
        make_ann_iris_kernel(n_layers, output_size),
        out_shape=jax.ShapeDtypeStruct((b_pad, output_size), out_dtype),
        grid_spec=pltpu.PrefetchScalarGridSpec(
            num_scalar_prefetch=0,
            grid=grid,
            in_specs=[
                # streamed per grid step (double-buffered by Pallas)
                pl.BlockSpec((tb, I), lambda i: (i, 0)),
                # weights/biases: constant block -> loaded once, VMEM-resident
                pl.BlockSpec(params["w_in"].shape, lambda i: (0, 0)),
                pl.BlockSpec(params["b_in"].shape, lambda i: (0, 0)),
                pl.BlockSpec(params["w_hid"].shape, lambda i: (0, 0, 0)),
                pl.BlockSpec(params["b_hid"].shape, lambda i: (0, 0, 0)),
                pl.BlockSpec(params["w_out"].shape, lambda i: (0, 0)),
                pl.BlockSpec(params["b_out"].shape, lambda i: (0, 0)),
            ],
            out_specs=pl.BlockSpec((tb, output_size), lambda i: (i, 0)),
        ),
        compiler_params=pltpu.CompilerParams(
            dimension_semantics=("parallel",)),
    )(x, params["w_in"], params["b_in"], params["w_hid"], params["b_hid"],
      params["w_out"], params["b_out"])

    return out_pad[:B] if b_pad != B else out_pad


def init_params(key, input_size, hidden_size, output_size, n_layers):
    """Deterministic synthetic parameters (PyTorch-Linear-like uniform init),
    stored pre-transposed: (in, out) instead of PyTorch's (out, in)."""
    keys = jax.random.split(key, 6)

    def lin_init(k, fan_in, shape):
        bound = 1.0 / jnp.sqrt(float(fan_in))
        return jax.random.uniform(k, shape, jnp.float32, -bound, bound)

    w_in = lin_init(keys[0], input_size, (input_size, hidden_size))
    b_in = lin_init(keys[1], input_size, (1, hidden_size))
    w_hid = lin_init(keys[2], hidden_size, (n_layers, hidden_size, hidden_size))
    b_hid = lin_init(keys[3], hidden_size, (n_layers, 1, hidden_size))
    w_out = lin_init(keys[4], hidden_size, (hidden_size, output_size))
    b_out = lin_init(keys[5], hidden_size, (1, output_size))
    return dict(w_in=w_in, b_in=b_in, w_hid=w_hid, b_hid=b_hid,
                w_out=w_out, b_out=b_out)


def prepare_params(params, output_size):
    """bf16 weights (halve weight DMA, native MXU dtype), f32 biases,
    output layer lane-padded to 128 so the MXU shape is native; the padded bias
    lanes get -1e30 so exp() of the pad logits is exactly 0 (f32 epilogue)."""
    o_pad = max(128, _round_up(output_size, 128))
    H = params["w_out"].shape[0]

    w_out_p = jnp.zeros((H, o_pad), jnp.float32).at[:, :output_size].set(params["w_out"])
    b_out_p = jnp.full((1, o_pad), -1e30, jnp.float32).at[:, :output_size].set(
        params["b_out"][0])

    return dict(
        w_in=params["w_in"].astype(jnp.bfloat16),
        b_in=params["b_in"],
        w_hid=params["w_hid"].astype(jnp.bfloat16),
        b_hid=params["b_hid"],
        w_out=w_out_p.astype(jnp.bfloat16),
        b_out=b_out_p,
    )


def ann_iris_reference(x, kparams, n_layers, output_size):
    """Pure-JAX reference (f32 math on the same bf16-quantized weights)."""
    h = jnp.maximum(x @ kparams["w_in"].astype(jnp.float32) + kparams["b_in"], 0.0)
    for i in range(n_layers):
        h = jnp.maximum(
            h @ kparams["w_hid"][i].astype(jnp.float32) + kparams["b_hid"][i], 0.0)
    logits = (h @ kparams["w_out"][:, :output_size].astype(jnp.float32)
              + kparams["b_out"][:, :output_size])
    return jax.nn.softmax(logits, axis=1)


if __name__ == "__main__":
    # Small shapes consistent with the Iris-style MLP; tb chosen so the grid
    # has several steps with a small tile (production default tb=2048).
    batch, input_size, hidden_size, output_size, n_layers = 64, 4, 32, 3, 2
    tb = 16  # multiple of 16, divides 64 -> grid of 4 steps

    key = jax.random.PRNGKey(0)
    kx, kp = jax.random.split(key)
    x = jax.random.normal(kx, (batch, input_size), jnp.float32)

    params = init_params(kp, input_size, hidden_size, output_size, n_layers)
    kparams = prepare_params(params, output_size)

    fwd = functools.partial(ann_iris_forward, n_layers=n_layers,
                            output_size=output_size, tb=tb)
    out = fwd(x, kparams)
    out = jax.block_until_ready(out)

    ref = ann_iris_reference(x, kparams, n_layers, output_size)
    assert out.shape == (batch, output_size)

    out_f32 = out.astype(jnp.float32)
    # bf16 matmul inputs + bf16 output + approx reciprocal -> loose tolerance.
    assert jnp.allclose(out_f32, ref, atol=2e-2, rtol=2e-2), "mismatch vs reference"
    assert jnp.allclose(jnp.sum(out_f32, axis=1), 1.0, atol=2e-2), \
        "softmax rows must sum to 1"

    print("KERNEL_OK")
</pallas_src>

<mosaic_0001>
module attributes {stable_mosaic.version = 11 : i64} {
  func.func @kernel(%arg0: i32, %arg1: memref<16x4xbf16, #tpu.memory_space<vmem>>, %arg2: memref<4x32xbf16, #tpu.memory_space<vmem>>, %arg3: memref<1x32xf32, #tpu.memory_space<vmem>>, %arg4: memref<2x32x32xbf16, #tpu.memory_space<vmem>>, %arg5: memref<2x1x32xf32, #tpu.memory_space<vmem>>, %arg6: memref<32x128xbf16, #tpu.memory_space<vmem>>, %arg7: memref<1x128xf32, #tpu.memory_space<vmem>>, %arg8: memref<16x3xbf16, #tpu.memory_space<vmem>>) attributes {dimension_semantics = [#tpu.dimension_semantics<parallel>], iteration_bounds = array<i64: 4>, scalar_prefetch = 0 : i64, scratch_operands = 0 : i64, tpu.core_type = #tpu.core_type<tc>, window_params = [{transform_indices = @transform_0, window_bounds = array<i64: 16, 4>}, {pipeline_mode = #tpu.pipeline_mode<synchronous>, transform_indices = @transform_1, window_bounds = array<i64: 4, 32>}, {pipeline_mode = #tpu.pipeline_mode<synchronous>, transform_indices = @transform_2, window_bounds = array<i64: 1, 32>}, {pipeline_mode = #tpu.pipeline_mode<synchronous>, transform_indices = @transform_3, window_bounds = array<i64: 2, 32, 32>}, {pipeline_mode = #tpu.pipeline_mode<synchronous>, transform_indices = @transform_4, window_bounds = array<i64: 2, 1, 32>}, {pipeline_mode = #tpu.pipeline_mode<synchronous>, transform_indices = @transform_5, window_bounds = array<i64: 32, 128>}, {pipeline_mode = #tpu.pipeline_mode<synchronous>, transform_indices = @transform_6, window_bounds = array<i64: 1, 128>}, {transform_indices = @transform_7, window_bounds = array<i64: 16, 3>}]} {
    %c0 = arith.constant 0 : index
    %c0_0 = arith.constant 0 : index
    %0 = vector.load %arg1[%c0, %c0_0] : memref<16x4xbf16, #tpu.memory_space<vmem>>, vector<16x4xbf16>
    %c0_1 = arith.constant 0 : index
    %c0_2 = arith.constant 0 : index
    %1 = vector.load %arg2[%c0_1, %c0_2] : memref<4x32xbf16, #tpu.memory_space<vmem>>, vector<4x32xbf16>
    %cst = arith.constant dense<0.000000e+00> : vector<16x32xf32>
    %2 = tpu.matmul %0, %1, %cst {dimension_numbers = #tpu.dot_dimension_numbers<[1], [0], [0], [1], [0, 0, 1, 1], [], []>} : vector<16x4xbf16>, vector<4x32xbf16>, vector<16x32xf32> -> vector<16x32xf32>
    %c0_3 = arith.constant 0 : index
    %c0_4 = arith.constant 0 : index
    %3 = vector.load %arg3[%c0_3, %c0_4] : memref<1x32xf32, #tpu.memory_space<vmem>>, vector<1x32xf32>
    %4 = vector.broadcast %3 : vector<1x32xf32> to vector<16x32xf32>
    %5 = arith.addf %2, %4 : vector<16x32xf32>
    %cst_5 = arith.constant 0.000000e+00 : f32
    %6 = vector.broadcast %cst_5 : f32 to vector<16x32xf32>
    %7 = arith.maximumf %5, %6 : vector<16x32xf32>
    %8 = arith.truncf %7 : vector<16x32xf32> to vector<16x32xbf16>
    %c0_6 = arith.constant 0 : index
    %c0_7 = arith.constant 0 : index
    %c0_8 = arith.constant 0 : index
    %9 = vector.load %arg4[%c0_6, %c0_7, %c0_8] : memref<2x32x32xbf16, #tpu.memory_space<vmem>>, vector<1x32x32xbf16>
    %10 = vector.shape_cast %9 : vector<1x32x32xbf16> to vector<32x32xbf16>
    %cst_9 = arith.constant dense<0.000000e+00> : vector<16x32xf32>
    %11 = tpu.matmul %8, %10, %cst_9 {dimension_numbers = #tpu.dot_dimension_numbers<[1], [0], [0], [1], [0, 0, 1, 1], [], []>} : vector<16x32xbf16>, vector<32x32xbf16>, vector<16x32xf32> -> vector<16x32xf32>
    %c0_10 = arith.constant 0 : index
    %c0_11 = arith.constant 0 : index
    %c0_12 = arith.constant 0 : index
    %12 = vector.load %arg5[%c0_10, %c0_11, %c0_12] : memref<2x1x32xf32, #tpu.memory_space<vmem>>, vector<1x1x32xf32>
    %13 = vector.shape_cast %12 : vector<1x1x32xf32> to vector<1x32xf32>
    %14 = vector.broadcast %13 : vector<1x32xf32> to vector<16x32xf32>
    %15 = arith.addf %11, %14 : vector<16x32xf32>
    %cst_13 = arith.constant 0.000000e+00 : f32
    %16 = vector.broadcast %cst_13 : f32 to vector<16x32xf32>
    %17 = arith.maximumf %15, %16 : vector<16x32xf32>
    %18 = arith.truncf %17 : vector<16x32xf32> to vector<16x32xbf16>
    %c1 = arith.constant 1 : index
    %c0_14 = arith.constant 0 : index
    %c0_15 = arith.constant 0 : index
    %19 = vector.load %arg4[%c1, %c0_14, %c0_15] : memref<2x32x32xbf16, #tpu.memory_space<vmem>>, vector<1x32x32xbf16>
    %20 = vector.shape_cast %19 : vector<1x32x32xbf16> to vector<32x32xbf16>
    %cst_16 = arith.constant dense<0.000000e+00> : vector<16x32xf32>
    %21 = tpu.matmul %18, %20, %cst_16 {dimension_numbers = #tpu.dot_dimension_numbers<[1], [0], [0], [1], [0, 0, 1, 1], [], []>} : vector<16x32xbf16>, vector<32x32xbf16>, vector<16x32xf32> -> vector<16x32xf32>
    %c1_17 = arith.constant 1 : index
    %c0_18 = arith.constant 0 : index
    %c0_19 = arith.constant 0 : index
    %22 = vector.load %arg5[%c1_17, %c0_18, %c0_19] : memref<2x1x32xf32, #tpu.memory_space<vmem>>, vector<1x1x32xf32>
    %23 = vector.shape_cast %22 : vector<1x1x32xf32> to vector<1x32xf32>
    %24 = vector.broadcast %23 : vector<1x32xf32> to vector<16x32xf32>
    %25 = arith.addf %21, %24 : vector<16x32xf32>
    %cst_20 = arith.constant 0.000000e+00 : f32
    %26 = vector.broadcast %cst_20 : f32 to vector<16x32xf32>
    %27 = arith.maximumf %25, %26 : vector<16x32xf32>
    %28 = arith.truncf %27 : vector<16x32xf32> to vector<16x32xbf16>
    %c0_21 = arith.constant 0 : index
    %c0_22 = arith.constant 0 : index
    %29 = vector.load %arg6[%c0_21, %c0_22] : memref<32x128xbf16, #tpu.memory_space<vmem>>, vector<32x128xbf16>
    %cst_23 = arith.constant dense<0.000000e+00> : vector<16x128xf32>
    %30 = tpu.matmul %28, %29, %cst_23 {dimension_numbers = #tpu.dot_dimension_numbers<[1], [0], [0], [1], [0, 0, 1, 1], [], []>} : vector<16x32xbf16>, vector<32x128xbf16>, vector<16x128xf32> -> vector<16x128xf32>
    %c0_24 = arith.constant 0 : index
    %c0_25 = arith.constant 0 : index
    %31 = vector.load %arg7[%c0_24, %c0_25] : memref<1x128xf32, #tpu.memory_space<vmem>>, vector<1x128xf32>
    %32 = vector.broadcast %31 : vector<1x128xf32> to vector<16x128xf32>
    %33 = arith.addf %30, %32 : vector<16x128xf32>
    %cst_26 = arith.constant dense<0xFF800000> : vector<16xf32>
    %34 = vector.multi_reduction <maximumf>, %33, %cst_26 [1] : vector<16x128xf32> to vector<16xf32>
    %35 = vector.shape_cast %34 : vector<16xf32> to vector<16x1xf32>
    %36 = vector.broadcast %35 : vector<16x1xf32> to vector<16x128xf32>
    %37 = arith.subf %33, %36 : vector<16x128xf32>
    %38 = math.exp %37 : vector<16x128xf32>
    %cst_27 = arith.constant dense<0.000000e+00> : vector<16xf32>
    %39 = vector.multi_reduction <add>, %38, %cst_27 [1] : vector<16x128xf32> to vector<16xf32>
    %40 = vector.shape_cast %39 : vector<16xf32> to vector<16x1xf32>
    %41 = tpu.reciprocal %40 {approx = true} : vector<16x1xf32> -> vector<16x1xf32>
    %42 = vector.broadcast %41 : vector<16x1xf32> to vector<16x128xf32>
    %43 = arith.mulf %38, %42 : vector<16x128xf32>
    %44 = vector.extract_strided_slice %43 {offsets = [0, 0], sizes = [16, 3], strides = [1, 1]} : vector<16x128xf32> to vector<16x3xf32>
    %45 = arith.truncf %44 : vector<16x3xf32> to vector<16x3xbf16>
    %c0_28 = arith.constant 0 : index
    %c0_29 = arith.constant 0 : index
    %46 = vector.load %arg8[%c0_28, %c0_29] : memref<16x3xbf16, #tpu.memory_space<vmem>>, vector<16x3xbf16>
    tpu.vector_store %arg8[%c0_28, %c0_29], %45 {strides = array<i32>} : memref<16x3xbf16, #tpu.memory_space<vmem>>, vector<16x3xbf16>,
    return
  }
  func.func @transform_0(%arg0: i32) -> (i32, i32) {
    %c0_i32 = arith.constant 0 : i32
    %c0_i32_0 = arith.constant 0 : i32
    return %arg0, %c0_i32 : i32, i32
  }
  func.func @transform_1(%arg0: i32) -> (i32, i32) {
    %c0_i32 = arith.constant 0 : i32
    %c0_i32_0 = arith.constant 0 : i32
    %c0_i32_1 = arith.constant 0 : i32
    return %c0_i32, %c0_i32_0 : i32, i32
  }
  func.func @transform_2(%arg0: i32) -> (i32, i32) {
    %c0_i32 = arith.constant 0 : i32
    %c0_i32_0 = arith.constant 0 : i32
    %c0_i32_1 = arith.constant 0 : i32
    return %c0_i32, %c0_i32_0 : i32, i32
  }
  func.func @transform_3(%arg0: i32) -> (i32, i32, i32) {
    %c0_i32 = arith.constant 0 : i32
    %c0_i32_0 = arith.constant 0 : i32
    %c0_i32_1 = arith.constant 0 : i32
    %c0_i32_2 = arith.constant 0 : i32
    return %c0_i32, %c0_i32_0, %c0_i32_1 : i32, i32, i32
  }
  func.func @transform_4(%arg0: i32) -> (i32, i32, i32) {
    %c0_i32 = arith.constant 0 : i32
    %c0_i32_0 = arith.constant 0 : i32
    %c0_i32_1 = arith.constant 0 : i32
    %c0_i32_2 = arith.constant 0 : i32
    return %c0_i32, %c0_i32_0, %c0_i32_1 : i32, i32, i32
  }
  func.func @transform_5(%arg0: i32) -> (i32, i32) {
    %c0_i32 = arith.constant 0 : i32
    %c0_i32_0 = arith.constant 0 : i32
    %c0_i32_1 = arith.constant 0 : i32
    return %c0_i32, %c0_i32_0 : i32, i32
  }
  func.func @transform_6(%arg0: i32) -> (i32, i32) {
    %c0_i32 = arith.constant 0 : i32
    %c0_i32_0 = arith.constant 0 : i32
    %c0_i32_1 = arith.constant 0 : i32
    return %c0_i32, %c0_i32_0 : i32, i32
  }
  func.func @transform_7(%arg0: i32) -> (i32, i32) {
    %c0_i32 = arith.constant 0 : i32
    %c0_i32_0 = arith.constant 0 : i32
    return %arg0, %c0_i32 : i32, i32
  }
}

</mosaic_0001>

<llo_original>
// kernel: tpu_custom_call.1
$region0: #{tpu_custom_call.1}
  #allocation0 [shape = 'u32[]', space=smem, size = 0x4, offset = 0x4, fixed_abs, tag = 'smem constant byte address 0x4 - core index']
  #allocation1 [shape = 'u32[144,128]{1,0:T(1,128)}', space=vmem, size = 0x12000, scoped, tag = 'internal scratch']
  %s0 = inlined_call_operand.vmem [shape: bf16[64,4], index: 0, kind: input, shape index: {}]
  %s1 = inlined_call_operand.hbm [shape: bf16[4,32], index: 1, kind: input, shape index: {}]
  %s2 = inlined_call_operand.vmem [shape: f32[1,32], index: 2, kind: input, shape index: {}]
  %s3 = inlined_call_operand.vmem [shape: bf16[2,32,32], index: 3, kind: input, shape index: {}]
  %s4 = inlined_call_operand.hbm [shape: f32[2,1,32], index: 4, kind: input, shape index: {}]
  %s5 = inlined_call_operand.vmem [shape: bf16[32,128], index: 5, kind: input, shape index: {}]
  %s6 = inlined_call_operand.vmem [shape: f32[1,128], index: 6, kind: input, shape index: {}]
  %s7 = inlined_call_operand.vmem [shape: bf16[64,3], index: 7, kind: output, shape index: {}]
  %s8 = sld [smem:[#allocation0]]
  $region69: #{tpu_custom_call.1} parent=0
    _
  %s10 = ssub.s32 1, %s8
  %s11 = scalar_select 0, %s10, %s8
  $region1: #{tpu_custom_call.1} parent=0
    #allocation2 [shape = 'u8[1024]{0}', space=vmem, size = 0x400, scoped, tag = 'input window, operand 1, single buffered']
    #allocation3 [shape = 's32[2]{0}', space=sflag, size = 0x8, scoped, tag = 'scoped memory for tpu_custom_call.1']
    #allocation4 [shape = 'u8[1024]{0}', space=vmem, size = 0x400, scoped, tag = 'input window, operand 4, single buffered']
    #allocation5 [shape = 's32[1]{0}', space=sflag, size = 0x4, scoped, tag = 'scoped memory for tpu_custom_call.1']
    %12 = vsyncpa [#allocation3], 0
    %13 = vsyncpa [#allocation5], 0
    loop: start=0, step=1, limit=6
    $region2: #{tpu_custom_call.1} parent=1 // loop_pre_header
      _
    $region3: #{tpu_custom_call.1} parent=1 // loop_header
      %s15 = sphi 0, %s19
      %p16 = scmp.ge.s32.totalorder %s15, 6
      %s25 = sphi 0, %s27
      %s28 = sphi 0, %s25
      %s29 = sphi 0, %s28
      %s45 = sphi 0, %s29
      %s49 = sphi 0, %s49
      %s51 = sphi 0, %s49
      %s52 = sphi 0, %s51
      %s66 = sphi 0, %s52
      %s70 = sphi 0, %s70
      %s72 = sphi 0, %s70
      %s73 = sphi 0, %s72
      %s87 = sphi 0, %s73
      %s91 = sphi 0, %s91
      %s93 = sphi 0, %s91
      %s94 = sphi 0, %s93
      %s108 = sphi 0, %s94
      %s112 = sphi 0, %s112
      %s114 = sphi 0, %s112
      %s115 = sphi 0, %s114
      %s129 = sphi 0, %s115
      %s133 = sphi 0, %s133
      %s135 = sphi 0, %s133
      %s136 = sphi 0, %s135
      %s150 = sphi 0, %s136
      %s154 = sphi 0, %s154
      %s156 = sphi 0, %s154
      %s157 = sphi 0, %s156
      %s171 = sphi 0, %s157
      %s177 = sphi 0, %s179
      %s180 = sphi 0, %s177
      %s181 = sphi 0, %s180
      %s197 = sphi 0, %s181
    $region4: #{tpu_custom_call.1} parent=1 // loop_header_branch
      %18 = sbr.rel (%p16) target = $region8
    $region5: #{tpu_custom_call.1} parent=1 // loop_body
      %s20 = ssub.s32 %s15, 1
      %s21 = ssub.s32 %s15, 2
      %s22 = sadd.s32 %s15, 1
      %s23 = ssub.s32 %s15, %s22
      %p24 = scmp.eq.s32.totalorder %s23, 0
      %s26 = sadd.s32 %s25, 1
      %s27 = scalar_select %p24, %s25, %s26
      %p30 = pneg %p24
      %p31 = scmp.eq.s32.totalorder %s15, 3
      %p32 = por %p30, %p31
      %p33 = scmp.ne.s32.totalorder %s25, %s28
      %p34 = scmp.eq.s32.totalorder %s15, 0
      %p35 = por %p33, %p34
      %p36 = scmp.ne.s32.totalorder %s25, %s28
      %p37 = scmp.eq.s32.totalorder %s20, 3
      %p38 = por %p36, %p37
      %p39 = scmp.ne.s32.totalorder %s28, %s29
      %p40 = scmp.eq.s32.totalorder %s20, 0
      %p41 = por %p39, %p40
      %p42 = scmp.ne.s32.totalorder %s28, %s29
      %p43 = scmp.eq.s32.totalorder %s21, 3
      %p44 = por %p42, %p43
      %p46 = scmp.ne.s32.totalorder %s29, %s45
      %p47 = scmp.eq.s32.totalorder %s21, 0
      %p48 = por %p46, %p47
      %s50 = sadd.s32 %s49, 1
      %p53 = scmp.eq.s32.totalorder %s15, 3
      %p54 = scmp.ne.s32.totalorder %s49, %s51
      %p55 = scmp.eq.s32.totalorder %s15, 0
      %p56 = por %p54, %p55
      %p57 = scmp.ne.s32.totalorder %s49, %s51
      %p58 = scmp.eq.s32.totalorder %s20, 3
      %p59 = por %p57, %p58
      %p60 = scmp.ne.s32.totalorder %s51, %s52
      %p61 = scmp.eq.s32.totalorder %s20, 0
      %p62 = por %p60, %p61
      %p63 = scmp.ne.s32.totalorder %s51, %s52
      %p64 = scmp.eq.s32.totalorder %s21, 3
      %p65 = por %p63, %p64
      %p67 = scmp.ne.s32.totalorder %s52, %s66
      %p68 = scmp.eq.s32.totalorder %s21, 0
      %p69 = por %p67, %p68
      %s71 = sadd.s32 %s70, 1
      %p74 = scmp.eq.s32.totalorder %s15, 3
      %p75 = scmp.ne.s32.totalorder %s70, %s72
      %p76 = scmp.eq.s32.totalorder %s15, 0
      %p77 = por %p75, %p76
      %p78 = scmp.ne.s32.totalorder %s70, %s72
      %p79 = scmp.eq.s32.totalorder %s20, 3
      %p80 = por %p78, %p79
      %p81 = scmp.ne.s32.totalorder %s72, %s73
      %p82 = scmp.eq.s32.totalorder %s20, 0
      %p83 = por %p81, %p82
      %p84 = scmp.ne.s32.totalorder %s72, %s73
      %p85 = scmp.eq.s32.totalorder %s21, 3
      %p86 = por %p84, %p85
      %p88 = scmp.ne.s32.totalorder %s73, %s87
      %p89 = scmp.eq.s32.totalorder %s21, 0
      %p90 = por %p88, %p89
      %s92 = sadd.s32 %s91, 1
      %p95 = scmp.eq.s32.totalorder %s15, 3
      %p96 = scmp.ne.s32.totalorder %s91, %s93
      %p97 = scmp.eq.s32.totalorder %s15, 0
      %p98 = por %p96, %p97
      %p99 = scmp.ne.s32.totalorder %s91, %s93
      %p100 = scmp.eq.s32.totalorder %s20, 3
      %p101 = por %p99, %p100
      %p102 = scmp.ne.s32.totalorder %s93, %s94
      %p103 = scmp.eq.s32.totalorder %s20, 0
      %p104 = por %p102, %p103
      %p105 = scmp.ne.s32.totalorder %s93, %s94
      %p106 = scmp.eq.s32.totalorder %s21, 3
      %p107 = por %p105, %p106
      %p109 = scmp.ne.s32.totalorder %s94, %s108
      %p110 = scmp.eq.s32.totalorder %s21, 0
      %p111 = por %p109, %p110
      %s113 = sadd.s32 %s112, 1
      %p116 = scmp.eq.s32.totalorder %s15, 3
      %p117 = scmp.ne.s32.totalorder %s112, %s114
      %p118 = scmp.eq.s32.totalorder %s15, 0
      %p119 = por %p117, %p118
      %p120 = scmp.ne.s32.totalorder %s112, %s114
      %p121 = scmp.eq.s32.totalorder %s20, 3
      %p122 = por %p120, %p121
      %p123 = scmp.ne.s32.totalorder %s114, %s115
      %p124 = scmp.eq.s32.totalorder %s20, 0
      %p125 = por %p123, %p124
      %p126 = scmp.ne.s32.totalorder %s114, %s115
      %p127 = scmp.eq.s32.totalorder %s21, 3
      %p128 = por %p126, %p127
      %p130 = scmp.ne.s32.totalorder %s115, %s129
      %p131 = scmp.eq.s32.totalorder %s21, 0
      %p132 = por %p130, %p131
      %s134 = sadd.s32 %s133, 1
      %p137 = scmp.eq.s32.totalorder %s15, 3
      %p138 = scmp.ne.s32.totalorder %s133, %s135
      %p139 = scmp.eq.s32.totalorder %s15, 0
      %p140 = por %p138, %p139
      %p141 = scmp.ne.s32.totalorder %s133, %s135
      %p142 = scmp.eq.s32.totalorder %s20, 3
      %p143 = por %p141, %p142
      %p144 = scmp.ne.s32.totalorder %s135, %s136
      %p145 = scmp.eq.s32.totalorder %s20, 0
      %p146 = por %p144, %p145
      %p147 = scmp.ne.s32.totalorder %s135, %s136
      %p148 = scmp.eq.s32.totalorder %s21, 3
      %p149 = por %p147, %p148
      %p151 = scmp.ne.s32.totalorder %s136, %s150
      %p152 = scmp.eq.s32.totalorder %s21, 0
      %p153 = por %p151, %p152
      %s155 = sadd.s32 %s154, 1
      %p158 = scmp.eq.s32.totalorder %s15, 3
      %p159 = scmp.ne.s32.totalorder %s154, %s156
      %p160 = scmp.eq.s32.totalorder %s15, 0
      %p161 = por %p159, %p160
      %p162 = scmp.ne.s32.totalorder %s154, %s156
      %p163 = scmp.eq.s32.totalorder %s20, 3
      %p164 = por %p162, %p163
      %p165 = scmp.ne.s32.totalorder %s156, %s157
      %p166 = scmp.eq.s32.totalorder %s20, 0
      %p167 = por %p165, %p166
      %p168 = scmp.ne.s32.totalorder %s156, %s157
      %p169 = scmp.eq.s32.totalorder %s21, 3
      %p170 = por %p168, %p169
      %p172 = scmp.ne.s32.totalorder %s157, %s171
      %p173 = scmp.eq.s32.totalorder %s21, 0
      %p174 = por %p172, %p173
      %s175 = ssub.s32 %s15, %s22
      %p176 = scmp.eq.s32.totalorder %s175, 0
      %s178 = sadd.s32 %s177, 1
      %s179 = scalar_select %p176, %s177, %s178
      %p182 = pneg %p176
      %p183 = scmp.eq.s32.totalorder %s15, 3
      %p184 = por %p182, %p183
      %p185 = scmp.ne.s32.totalorder %s177, %s180
      %p186 = scmp.eq.s32.totalorder %s15, 0
      %p187 = por %p185, %p186
      %p188 = scmp.ne.s32.totalorder %s177, %s180
      %p189 = scmp.eq.s32.totalorder %s20, 3
      %p190 = por %p188, %p189
      %p191 = scmp.ne.s32.totalorder %s180, %s181
      %p192 = scmp.eq.s32.totalorder %s20, 0
      %p193 = por %p191, %p192
      %p194 = scmp.ne.s32.totalorder %s180, %s181
      %p195 = scmp.eq.s32.totalorder %s21, 3
      %p196 = por %p194, %p195
      %p198 = scmp.ne.s32.totalorder %s181, %s197
      %p199 = scmp.eq.s32.totalorder %s21, 0
      %p200 = por %p198, %p199
      %p201 = scmp.le.s32.totalorder 1, %s15
      %p202 = scmp.lt.s32.totalorder %s15, 5
      %p203 = pnand %p201, %p202
      %p204 = pneg %p203
      // Predicated region
      $region9: #{tpu_custom_call.1} parent=5 // pred_check
        _
      $region10: #{tpu_custom_call.1} parent=5 // pred_check_branch
        %206 = sbr.rel (%p203) target = $region12
      $region11: #{tpu_custom_call.1} parent=5 // pred_region
        %s207 = ssub.s32 %s15, 1
        // Predicated region
        $region13: #{tpu_custom_call.1} parent=11 // pred_check
          %p208 = pneg %p62
        $region14: #{tpu_custom_call.1} parent=11 // pred_check_branch
          %210 = sbr.rel (%p208) target = $region16
        $region15: #{tpu_custom_call.1} parent=11 // pred_region
          %s212 = ssub.s32 32, 32
          %213 = vsyncadd [#allocation3], %s212
          %s215 = sshll.u32 [#allocation2], 4
          %s216 = int_to_ptr.vmem [resolvable:$true] %s215
          %218 = dma.hbm_to_vmem [thread:$0]  %s1, 32, %s216, [#allocation3]
        $region16: #{tpu_custom_call.1} parent=11 // pred_fallthru
          _
        // Predicated region
        $region17: #{tpu_custom_call.1} parent=11 // pred_check
          %p219 = pneg %p83
        $region18: #{tpu_custom_call.1} parent=11 // pred_check_branch
          %221 = sbr.rel (%p219) target = $region20
        $region19: #{tpu_custom_call.1} parent=11 // pred_region
          _
        $region20: #{tpu_custom_call.1} parent=11 // pred_fallthru
          _
        // Predicated region
        $region21: #{tpu_custom_call.1} parent=11 // pred_check
          %p222 = pneg %p104
        $region22: #{tpu_custom_call.1} parent=11 // pred_check_branch
          %224 = sbr.rel (%p222) target = $region24
        $region23: #{tpu_custom_call.1} parent=11 // pred_region
          _
        $region24: #{tpu_custom_call.1} parent=11 // pred_fallthru
          _
        // Predicated region
        $region25: #{tpu_custom_call.1} parent=11 // pred_check
          %p225 = pneg %p125
        $region26: #{tpu_custom_call.1} parent=11 // pred_check_branch
          %227 = sbr.rel (%p225) target = $region28
        $region27: #{tpu_custom_call.1} parent=11 // pred_region
          %s229 = ssub.s32 32, 32
          %230 = vsyncadd [#allocation5], %s229
          %s231 = sshll.u32 [#allocation4], 4
          %s232 = int_to_ptr.vmem [resolvable:$true] %s231
          %237 = dma.hbm_to_vmem [thread:$0]  %s4, 32, %s232, [#allocation5], 16, 16, 1
        $region28: #{tpu_custom_call.1} parent=11 // pred_fallthru
          _
        // Predicated region
        $region29: #{tpu_custom_call.1} parent=11 // pred_check
          %p238 = pneg %p146
        $region30: #{tpu_custom_call.1} parent=11 // pred_check_branch
          %240 = sbr.rel (%p238) target = $region32
        $region31: #{tpu_custom_call.1} parent=11 // pred_region
          _
        $region32: #{tpu_custom_call.1} parent=11 // pred_fallthru
          _
        // Predicated region
        $region33: #{tpu_custom_call.1} parent=11 // pred_check
          %p241 = pneg %p167
        $region34: #{tpu_custom_call.1} parent=11 // pred_check_branch
          %243 = sbr.rel (%p241) target = $region36
        $region35: #{tpu_custom_call.1} parent=11 // pred_region
          _
        $region36: #{tpu_custom_call.1} parent=11 // pred_fallthru
          _
      $region12: #{tpu_custom_call.1} parent=5 // pred_fallthru
        _
      %p244 = scmp.lt.s32.totalorder %s15, 4
      // Predicated region
      $region37: #{tpu_custom_call.1} parent=5 // pred_check
        %p245 = pneg %p244
      $region38: #{tpu_custom_call.1} parent=5 // pred_check_branch
        %247 = sbr.rel (%p245) target = $region40
      $region39: #{tpu_custom_call.1} parent=5 // pred_region
        // Predicated region
        $region41: #{tpu_custom_call.1} parent=39 // pred_check
          %p248 = pneg %p35
        $region42: #{tpu_custom_call.1} parent=39 // pred_check_branch
          %250 = sbr.rel (%p248) target = $region44
        $region43: #{tpu_custom_call.1} parent=39 // pred_region
          %s251 = smul.u32 2, %s15
          %p252 = scmp.lt.s32.totalorder %s251, 7
          %s253 = scalar_select %p252, %s251, 7
          %s254 = smul.addr %s253, 4
          %s255 = scalar_lea.vmem %s0, %s254
          %s256 = smul.u32 2, %s15
        $region44: #{tpu_custom_call.1} parent=39 // pred_fallthru
          _
      $region40: #{tpu_custom_call.1} parent=5 // pred_fallthru
        _
      %p257 = scmp.le.s32.totalorder 1, %s15
      %p258 = scmp.lt.s32.totalorder %s15, 5
      %p259 = pnand %p257, %p258
      %p260 = pneg %p259
      // Predicated region
      $region45: #{tpu_custom_call.1} parent=5 // pred_check
        _
      $region46: #{tpu_custom_call.1} parent=5 // pred_check_branch
        %262 = sbr.rel (%p259) target = $region48
      $region47: #{tpu_custom_call.1} parent=5 // pred_region
        %s263 = ssub.s32 %s15, 1
        // Predicated region
        $region49: #{tpu_custom_call.1} parent=47 // pred_check
          %p264 = pneg %p62
        $region50: #{tpu_custom_call.1} parent=47 // pred_check_branch
          %266 = sbr.rel (%p264) target = $region52
        $region51: #{tpu_custom_call.1} parent=47 // pred_region
          %267 = dma.done [#allocation3], 32
        $region52: #{tpu_custom_call.1} parent=47 // pred_fallthru
          _
        // Predicated region
        $region53: #{tpu_custom_call.1} parent=47 // pred_check
          %p268 = pneg %p125
        $region54: #{tpu_custom_call.1} parent=47 // pred_check_branch
          %270 = sbr.rel (%p268) target = $region56
        $region55: #{tpu_custom_call.1} parent=47 // pred_region
          %271 = dma.done [#allocation5], 32
        $region56: #{tpu_custom_call.1} parent=47 // pred_fallthru
          _
        %s272 = smul.u32 2, %s20
        %p273 = scmp.lt.s32.totalorder %s272, 7
        %s274 = scalar_select %p273, %s272, 7
        %s275 = smul.addr %s274, 4
        %s276 = scalar_lea.vmem %s0, %s275
        %p277 = pneg %p41
        %p278 = pneg %p38
        %p279 = pneg %p62
        %p280 = pneg %p59
        %p281 = pneg %p83
        %p282 = pneg %p80
        %p283 = pneg %p104
        %p284 = pneg %p101
        %p285 = pneg %p125
        %p286 = pneg %p122
        %p287 = pneg %p146
        %p288 = pneg %p143
        %p289 = pneg %p167
        %p290 = pneg %p164
        %p291 = pneg %p193
        %p292 = pneg %p190
        %s293 = smul.u32 2, %s20
        %p294 = scmp.lt.s32.totalorder %s293, 7
        %s295 = scalar_select %p294, %s293, 7
        %s296 = smul.addr %s295, 4
        %s297 = scalar_lea.vmem %s7, %s296
        %s298 = smul.u32 2, %s20
        %p299 = scmp.lt.s32.totalorder %s298, 7
        %s300 = scalar_select %p299, %s298, 7
        %s301 = smul.addr %s300, 4
        %s302 = scalar_lea.vmem %s0, %s301
        %s303 = smul.u32 2, %s20
        %s304 = smul.u32 2, %s20
        %p305 = scmp.lt.s32.totalorder %s304, 7
        %s306 = scalar_select %p305, %s304, 7
        %s307 = smul.addr %s306, 4
        %s308 = scalar_lea.vmem %s7, %s307
        %s309 = smul.u32 2, %s20
        %v311 = vld [vmem:[%s302] sm:$0xf]
        %v312 = vld [vmem:[%s302 + $0x4] sm:$0xf]
        %v313 = vld [vmem:[#allocation2] sm:$0x3]
        %v314 = vld [vmem:[%s2] sm:$0x1]
        %v316 = vlaneseq
        %v317 = vshrl.u32 %v316, 7
        %v318 = vsub.s32 0, %v317
        %v319 = vrot.slane %v314, %v318
        %v323 = vunpack.c.l.b16 %v311
        %v324 = vunpack.c.l.b16 %v312
        %v325 = vpack.c.b16 %v324, %v323
        %vm326 = vcmask 31744
        %v328 = vsel %vm326, %v325, 0
        %vm330 = vcmask 1041408
        %v332 = vsel %vm330, %v313, 0
        %334 = vmatprep.subr.bf16.mxu0 0
        %335 = vmatpush1.bf16.msra.mxu0 %v332
        %336 = vmatprep.subr.bf16.mxu0 0
        %337 = vmatpush1.bf16.msra.mxu0 0
        %338 = vmatprep.subr.bf16.mxu0 0
        %339 = vmatpush1.bf16.msra.mxu0 0
        %340 = vmatprep.subr.bf16.mxu0 0
        %341 = vmatpush1.bf16.msra.mxu0 0
        %342 = vmatprep.subr.bf16.mxu0 0
        %343 = vmatpush1.bf16.msra.mxu0 0
        %344 = vmatprep.subr.bf16.mxu0 0
        %345 = vmatpush1.bf16.msra.mxu0 0
        %346 = vmatprep.subr.bf16.mxu0 0
        %347 = vmatpush1.bf16.msra.mxu0 0
        %348 = vmatprep.subr.bf16.mxu0 0
        %349 = vmatpush1.bf16.msra.mxu0 0
        %350 = vmatprep.subr.bf16.mxu0 0
        %351 = vmatpush1.bf16.msra.mxu0 0
        %352 = vmatprep.subr.bf16.mxu0 0
        %353 = vmatpush1.bf16.msra.mxu0 0
        %354 = vmatprep.subr.bf16.mxu0 0
        %355 = vmatpush1.bf16.msra.mxu0 0
        %356 = vmatprep.subr.bf16.mxu0 0
        %357 = vmatpush1.bf16.msra.mxu0 0
        %358 = vmatprep.subr.bf16.mxu0 0
        %359 = vmatpush1.bf16.msra.mxu0 0
        %360 = vmatprep.subr.bf16.mxu0 0
        %361 = vmatpush1.bf16.msra.mxu0 0
        %362 = vmatprep.subr.bf16.mxu0 0
        %363 = vmatpush1.bf16.msra.mxu0 0
        %364 = vmatprep.subr.bf16.mxu0 0
        %365 = vmatpush1.bf16.msra.mxu0 0
        %366 = vmatprep.mubr.bf16.mxu0 0
        %367 = vmatmul.mubr.bf16.gmra.mrb[0].mxu0 %v328
        %v368 = vpop.f32.mrb[0].mxu0
        %v369 = vadd.f32 %v319, %v368
        %v370 = vpop.f32.mrb[0].mxu0
        %v371 = vpop.f32.mrb[0].mxu0
        %v372 = vadd.f32 %v319, %v371
        %v373 = vpop.f32.mrb[0].mxu0
        %374 = vdwg.mxu0
        %v375 = vmax.f32 %v369, 0.0
        %v376 = vmax.f32 %v372, 0.0
        %v377 = vpack.c.bf16 %v376, %v375
        %v378 = vld [vmem:[%s3] sm:$0xf]
        %v379 = vld [vmem:[%s3 + $0x4] sm:$0xf]
        %v380 = vld [vmem:[%s3 + $0x8] sm:$0xf]
        %v381 = vld [vmem:[%s3 + $0xc] sm:$0xf]
        %v382 = vld [vmem:[#allocation4] sm:$0x1]
        %v384 = vlaneseq
        %v385 = vshrl.u32 %v384, 7
        %v386 = vsub.s32 0, %v385
        %v387 = vrot.slane %v382, %v386
        %v393 = vunpack.c.l.b16 %v378
        %v394 = vunpack.c.l.b16 %v379
        %v395 = vunpack.c.l.b16 %v380
        %v396 = vunpack.c.l.b16 %v381
        %v397 = vpack.c.b16 %v394, %v393
        %v398 = vpack.c.b16 %v396, %v395
        %vm401 = vcmask 261120
        %v403 = vsel %vm401, %v377, 0
        %405 = vmatprep.subr.bf16.mxu0 0
        %406 = vmatpush1.bf16.msra.mxu0 %v397
        %407 = vmatprep.subr.bf16.mxu0 0
        %408 = vmatpush1.bf16.msra.mxu0 %v398
        %409 = vmatprep.subr.bf16.mxu0 0
        %410 = vmatpush1.bf16.msra.mxu0 0
        %411 = vmatprep.subr.bf16.mxu0 0
        %412 = vmatpush1.bf16.msra.mxu0 0
        %413 = vmatprep.subr.bf16.mxu0 0
        %414 = vmatpush1.bf16.msra.mxu0 0
        %415 = vmatprep.subr.bf16.mxu0 0
        %416 = vmatpush1.bf16.msra.mxu0 0
        %417 = vmatprep.subr.bf16.mxu0 0
        %418 = vmatpush1.bf16.msra.mxu0 0
        %419 = vmatprep.subr.bf16.mxu0 0
        %420 = vmatpush1.bf16.msra.mxu0 0
        %421 = vmatprep.subr.bf16.mxu0 0
        %422 = vmatpush1.bf16.msra.mxu0 0
        %423 = vmatprep.subr.bf16.mxu0 0
        %424 = vmatpush1.bf16.msra.mxu0 0
        %425 = vmatprep.subr.bf16.mxu0 0
        %426 = vmatpush1.bf16.msra.mxu0 0
        %427 = vmatprep.subr.bf16.mxu0 0
        %428 = vmatpush1.bf16.msra.mxu0 0
        %429 = vmatprep.subr.bf16.mxu0 0
        %430 = vmatpush1.bf16.msra.mxu0 0
        %431 = vmatprep.subr.bf16.mxu0 0
        %432 = vmatpush1.bf16.msra.mxu0 0
        %433 = vmatprep.subr.bf16.mxu0 0
        %434 = vmatpush1.bf16.msra.mxu0 0
        %435 = vmatprep.subr.bf16.mxu0 0
        %436 = vmatpush1.bf16.msra.mxu0 0
        %437 = vmatprep.mubr.bf16.mxu0 0
        %438 = vmatmul.mubr.bf16.gmra.mrb[0].mxu0 %v403
        %v439 = vpop.f32.mrb[0].mxu0
        %v440 = vadd.f32 %v387, %v439
        %v441 = vpop.f32.mrb[0].mxu0
        %v442 = vpop.f32.mrb[0].mxu0
        %v443 = vadd.f32 %v387, %v442
        %v444 = vpop.f32.mrb[0].mxu0
        %445 = vdwg.mxu0
        %v446 = vmax.f32 %v440, 0.0
        %v447 = vmax.f32 %v443, 0.0
        %v448 = vpack.c.bf16 %v447, %v446
        %s449 = scalar_lea.vmem %s3, 16
        %v450 = vld [vmem:[%s449] sm:$0xf]
        %v451 = vld [vmem:[%s449 + $0x4] sm:$0xf]
        %v452 = vld [vmem:[%s449 + $0x8] sm:$0xf]
        %v453 = vld [vmem:[%s449 + $0xc] sm:$0xf]
        %s454 = scalar_lea.vmem [#allocation4], 1
        %v455 = vld [vmem:[%s454] sm:$0x1]
        %v457 = vlaneseq
        %v458 = vshrl.u32 %v457, 7
        %v459 = vsub.s32 0, %v458
        %v460 = vrot.slane %v455, %v459
        %v466 = vunpack.c.l.b16 %v450
        %v467 = vunpack.c.l.b16 %v451
        %v468 = vunpack.c.l.b16 %v452
        %v469 = vunpack.c.l.b16 %v453
        %v470 = vpack.c.b16 %v467, %v466
        %v471 = vpack.c.b16 %v469, %v468
        %v475 = vsel %vm401, %v448, 0
        %477 = vmatprep.subr.bf16.mxu0 0
        %478 = vmatpush1.bf16.msra.mxu0 %v470
        %479 = vmatprep.subr.bf16.mxu0 0
        %480 = vmatpush1.bf16.msra.mxu0 %v471
        %481 = vmatprep.subr.bf16.mxu0 0
        %482 = vmatpush1.bf16.msra.mxu0 0
        %483 = vmatprep.subr.bf16.mxu0 0
        %484 = vmatpush1.bf16.msra.mxu0 0
        %485 = vmatprep.subr.bf16.mxu0 0
        %486 = vmatpush1.bf16.msra.mxu0 0
        %487 = vmatprep.subr.bf16.mxu0 0
        %488 = vmatpush1.bf16.msra.mxu0 0
        %489 = vmatprep.subr.bf16.mxu0 0
        %490 = vmatpush1.bf16.msra.mxu0 0
        %491 = vmatprep.subr.bf16.mxu0 0
        %492 = vmatpush1.bf16.msra.mxu0 0
        %493 = vmatprep.subr.bf16.mxu0 0
        %494 = vmatpush1.bf16.msra.mxu0 0
        %495 = vmatprep.subr.bf16.mxu0 0
        %496 = vmatpush1.bf16.msra.mxu0 0
        %497 = vmatprep.subr.bf16.mxu0 0
        %498 = vmatpush1.bf16.msra.mxu0 0
        %499 = vmatprep.subr.bf16.mxu0 0
        %500 = vmatpush1.bf16.msra.mxu0 0
        %501 = vmatprep.subr.bf16.mxu0 0
        %502 = vmatpush1.bf16.msra.mxu0 0
        %503 = vmatprep.subr.bf16.mxu0 0
        %504 = vmatpush1.bf16.msra.mxu0 0
        %505 = vmatprep.subr.bf16.mxu0 0
        %506 = vmatpush1.bf16.msra.mxu0 0
        %507 = vmatprep.subr.bf16.mxu0 0
        %508 = vmatpush1.bf16.msra.mxu0 0
        %509 = vmatprep.mubr.bf16.mxu0 0
        %510 = vmatmul.mubr.bf16.gmra.mrb[0].mxu0 %v475
        %v511 = vpop.f32.mrb[0].mxu0
        %v512 = vadd.f32 %v460, %v511
        %v513 = vpop.f32.mrb[0].mxu0
        %v514 = vpop.f32.mrb[0].mxu0
        %v515 = vadd.f32 %v460, %v514
        %v516 = vpop.f32.mrb[0].mxu0
        %517 = vdwg.mxu0
        %v518 = vmax.f32 %v512, 0.0
        %v519 = vmax.f32 %v515, 0.0
        %v520 = vpack.c.bf16 %v519, %v518
        %v521 = vld [vmem:[%s5] sm:$0xf]
        %v522 = vld [vmem:[%s5 + $0x4] sm:$0xf]
        %v523 = vld [vmem:[%s5 + $0x8] sm:$0xf]
        %v524 = vld [vmem:[%s5 + $0xc] sm:$0xf]
        %v525 = vld [vmem:[%s6] sm:$0x1]
        %v527 = vlaneseq
        %v528 = vshrl.u32 %v527, 7
        %v529 = vsub.s32 0, %v528
        %v530 = vrot.slane %v525, %v529
        %v536 = vunpack.c.l.b16 %v521
        %v537 = vunpack.c.l.b16 %v522
        %v538 = vunpack.c.l.b16 %v523
        %v539 = vunpack.c.l.b16 %v524
        %v540 = vpack.c.b16 %v537, %v536
        %v541 = vpack.c.b16 %v539, %v538
        %v545 = vsel %vm401, %v520, 0
        %547 = vmatprep.subr.bf16.mxu0 0
        %548 = vmatpush1.bf16.msra.mxu0 %v540
        %549 = vmatprep.subr.bf16.mxu0 0
        %550 = vmatpush1.bf16.msra.mxu0 %v541
        %551 = vmatprep.subr.bf16.mxu0 0
        %552 = vmatpush1.bf16.msra.mxu0 0
        %553 = vmatprep.subr.bf16.mxu0 0
        %554 = vmatpush1.bf16.msra.mxu0 0
        %555 = vmatprep.subr.bf16.mxu0 0
        %556 = vmatpush1.bf16.msra.mxu0 0
        %557 = vmatprep.subr.bf16.mxu0 0
        %558 = vmatpush1.bf16.msra.mxu0 0
        %559 = vmatprep.subr.bf16.mxu0 0
        %560 = vmatpush1.bf16.msra.mxu0 0
        %561 = vmatprep.subr.bf16.mxu0 0
        %562 = vmatpush1.bf16.msra.mxu0 0
        %563 = vmatprep.subr.bf16.mxu0 0
        %564 = vmatpush1.bf16.msra.mxu0 0
        %565 = vmatprep.subr.bf16.mxu0 0
        %566 = vmatpush1.bf16.msra.mxu0 0
        %567 = vmatprep.subr.bf16.mxu0 0
        %568 = vmatpush1.bf16.msra.mxu0 0
        %569 = vmatprep.subr.bf16.mxu0 0
        %570 = vmatpush1.bf16.msra.mxu0 0
        %571 = vmatprep.subr.bf16.mxu0 0
        %572 = vmatpush1.bf16.msra.mxu0 0
        %573 = vmatprep.subr.bf16.mxu0 0
        %574 = vmatpush1.bf16.msra.mxu0 0
        %575 = vmatprep.subr.bf16.mxu0 0
        %576 = vmatpush1.bf16.msra.mxu0 0
        %577 = vmatprep.subr.bf16.mxu0 0
        %578 = vmatpush1.bf16.msra.mxu0 0
        %579 = vmatprep.mubr.bf16.mxu0 0
        %580 = vmatmul.mubr.bf16.gmra.mrb[0].mxu0 %v545
        %v581 = vpop.f32.mrb[0].mxu0
        %v582 = vadd.f32 %v530, %v581
        %v583 = vpop.f32.mrb[0].mxu0
        %v584 = vpop.f32.mrb[0].mxu0
        %v585 = vadd.f32 %v530, %v584
        %v586 = vpop.f32.mrb[0].mxu0
        %587 = vdwg.mxu0
        %588 = vmax.xlane.f32.xlu0 %v582
        %v589 = vpop.xlane.xlu0 %588
        %590 = vmax.xlane.f32.xlu0 %v585
        %v591 = vpop.xlane.xlu0 %590
        %v592 = vsub.f32 %v582, %v589
        %v593 = vsub.f32 %v585, %v591
        %v594 = vmul.f32 %v592, 1.442695
        %v595 = vpow.pop %v594
        %v596 = vmul.f32 %v593, 1.442695
        %v597 = vpow.pop %v596
        %598 = vadd.xlane.f32.xlu0 %v595
        %v599 = vpop.xlane.xlu0 %598
        %600 = vadd.xlane.f32.xlu0 %v597
        %v601 = vpop.xlane.xlu0 %600
        %v602 = vrcp.pop %v599
        %v603 = vrcp.pop %v601
        %v604 = vmul.f32 %v595, %v602
        %v605 = vmul.f32 %v597, %v603
        %v606 = vpack.c.bf16 %v605, %v604
        %v608 = vunpack.c.l.b16 %v606
        %v609 = vunpack.c.h.b16 %v606
        %v610 = vpack.c.b16 %v608, %v608
        %v611 = vpack.c.b16 %v609, %v609
        %vm614 = vcmask 19456
        %615 = vst.msk [vmem:[%s308] sm:$0xf] %vm614, %v610
        %616 = vst.msk [vmem:[%s308 + $0x4] sm:$0xf] %vm614, %v611
        %s617 = smul.u32 2, %s20
        %p618 = scmp.lt.s32.totalorder %s617, 7
        %s619 = scalar_select %p618, %s617, 7
        %s620 = smul.addr %s619, 4
        %s621 = scalar_lea.vmem %s7, %s620
        // Predicated region
        $region57: #{tpu_custom_call.1} parent=47 // pred_check
          %p622 = pneg %p190
        $region58: #{tpu_custom_call.1} parent=47 // pred_check_branch
          %624 = sbr.rel (%p622) target = $region60
        $region59: #{tpu_custom_call.1} parent=47 // pred_region
          %s625 = smul.u32 2, %s20
        $region60: #{tpu_custom_call.1} parent=47 // pred_fallthru
          _
      $region48: #{tpu_custom_call.1} parent=5 // pred_fallthru
        _
      %p626 = scmp.le.s32.totalorder 2, %s15
      // Predicated region
      $region61: #{tpu_custom_call.1} parent=5 // pred_check
        %p627 = pneg %p626
      $region62: #{tpu_custom_call.1} parent=5 // pred_check_branch
        %629 = sbr.rel (%p627) target = $region64
      $region63: #{tpu_custom_call.1} parent=5 // pred_region
        %s630 = ssub.s32 %s15, 2
        // Predicated region
        $region65: #{tpu_custom_call.1} parent=63 // pred_check
          %p631 = pneg %p196
        $region66: #{tpu_custom_call.1} parent=63 // pred_check_branch
          %633 = sbr.rel (%p631) target = $region68
        $region67: #{tpu_custom_call.1} parent=63 // pred_region
          %s634 = smul.u32 2, %s21
          %p635 = scmp.lt.s32.totalorder %s634, 7
          %s636 = scalar_select %p635, %s634, 7
          %s637 = smul.addr %s636, 4
          %s638 = scalar_lea.vmem %s7, %s637
        $region68: #{tpu_custom_call.1} parent=63 // pred_fallthru
          _
      $region64: #{tpu_custom_call.1} parent=5 // pred_fallthru
        _
    $region6: #{tpu_custom_call.1} parent=1 // loop_footer
      %s19 = sadd.s32 1, %s15
    $region7: #{tpu_custom_call.1} parent=1 // loop_footer_branch
      %14 = sbr.rel target = $region3
    $region8: #{tpu_custom_call.1} parent=1 // loop_exit
      _
    %639 = vsyncpa [#allocation3], 1
    %s640 = scalar_lea.sflag [#allocation3], 1
    %641 = vsyncpa %s640, 1
    %642 = vsyncpa [#allocation5], 1

</llo_original>
